<compile_context>
chip_gen: v5e
topology: v5e:2x2
jax: 0.10.0
libtpu: 0.0.40
codegen_flags: <defaults>
</compile_context>

<pallas_src>
import functools
import math

import jax
import jax.numpy as jnp
from jax.experimental import pallas as pl
from jax.experimental.pallas import tpu as pltpu


def _round_up(n, m):
    return ((n + m - 1) // m) * m


# ---------------------------------------------------------------------------
# Pallas kernel: complex contraction over input channels for one batch block.
#   out[b, o, m] = sum_i x[b, i, m] * w[i, o, m]        (complex)
# ---------------------------------------------------------------------------
def _spectral_mix_kernel(x_ref, w_ref, o_ref):
    # x_ref: (bb, 2*Cin,  mt)  rows [0:Cin]   = Re(x_i), [Cin:2Cin]   = Im(x_i)
    # w_ref: (Cin, 2*Cout, mt) rows [0:Cout]  = Re(w_i), [Cout:2Cout] = Im(w_i)
    # o_ref: (bb, 2*Cout, mt)  rows [0:Cout]  = Re(out), [Cout:2Cout] = Im(out)
    bb, two_cin, mt = x_ref.shape
    cin = two_cin // 2
    cout = o_ref.shape[1] // 2

    x = x_ref[...]                                   # one dense tile load
    acc_r = jnp.zeros((bb, cout, mt), jnp.float32)
    acc_i = jnp.zeros((bb, cout, mt), jnp.float32)

    # Cin is small here -> static unroll; channel index i steps the leading
    # (non-tiled) axis of the weight block (pure address stepping).
    # TODO(synk): for Cin >~ 16 switch to lax.fori_loop(..., unroll=True) and
    # accumulate into a VMEM scratch so the live vreg working set stays
    # bounded; keep the contraction on the VPU (per-mode Cin x Cout matmuls
    # would underfill the MXU).
    for i in range(cin):
        # Hoist this channel's Re/Im sublane broadcast once; the four
        # multiplies reuse it instead of re-splatting per op.
        xr = jnp.broadcast_to(x[:, i:i + 1, :], (bb, cout, mt))
        xi = jnp.broadcast_to(x[:, cin + i:cin + i + 1, :], (bb, cout, mt))
        wr = w_ref[i, :cout, :].astype(jnp.float32)[None]    # (1, cout, mt)
        wi = w_ref[i, cout:, :].astype(jnp.float32)[None]
        acc_r = acc_r + (xr * wr - xi * wi)
        acc_i = acc_i + (xr * wi + xi * wr)

    # Single sublane/lane-dense store of the whole (bb, 2*Cout, mt) tile.
    o_ref[...] = jnp.concatenate([acc_r, acc_i], axis=1)


# ---------------------------------------------------------------------------
# Weight packing — pure data movement over the full weight tensors.
# Call ONCE per parameter update, not on every forward.
# ---------------------------------------------------------------------------
def pack_spectral_weights(weights1, weights2, dtype=jnp.float32):
    """Pack (Cin, Cout, m1, m2, 2) weights1/weights2 into the kernel layout.

    Returns (Cin_p, 2*Cout_p, Mp) with the two mode blocks concatenated on
    the lane axis (weights1 modes | weights2 modes), lane-padded to 128, and
    Re rows stacked above Im rows (2 planes only — minimal weight bytes).
    `dtype=jnp.bfloat16` is an optional VMEM/bandwidth lever for v6e/v7x
    (validate accuracy); keep float32 on v5e / when tolerances are tight.
    """
    cin, cout, m1, m2, _ = weights1.shape
    M = m1 * m2
    M2 = 2 * M
    Mp = _round_up(M2, 128)          # lane-dense mode axis
    cin_p = _round_up(cin, 4)        # 2*Cin_p  multiple of 8 (dense x tile)
    cout_p = _round_up(cout, 4)      # 2*Cout_p multiple of 8 (dense w/out tiles)

    w = jnp.concatenate(
        [weights1.reshape(cin, cout, M, 2),
         weights2.reshape(cin, cout, M, 2)], axis=2)          # (Cin,Cout,2M,2)
    wr = jnp.pad(w[..., 0], ((0, cin_p - cin), (0, cout_p - cout), (0, Mp - M2)))
    wi = jnp.pad(w[..., 1], ((0, cin_p - cin), (0, cout_p - cout), (0, Mp - M2)))
    return jnp.concatenate([wr, wi], axis=1).astype(dtype)    # (Cin_p,2Cout_p,Mp)


# ---------------------------------------------------------------------------
# Forward pass (hot path) — takes pre-packed weights.
# ---------------------------------------------------------------------------
def spectral_conv2d_uno_packed(x, w_stack, *, out_codim, dim1, dim2,
                               modes1, modes2):
    """x: (B, Cin, H, W) float32; w_stack: output of pack_spectral_weights."""
    B, Cin, H, W = x.shape
    Cout = out_codim
    cin_p = w_stack.shape[0]
    cout_p = w_stack.shape[1] // 2
    Mp = w_stack.shape[2]
    M = modes1 * modes2
    M2 = 2 * M

    # Clear mode-count checks on BOTH the input and the output spectra.
    assert modes1 <= H and modes2 <= W // 2 + 1, \
        "modes exceed the input rfft spectrum"
    assert 2 * modes1 <= dim1, "top/bottom mode blocks overlap in out_ft"
    assert modes2 <= dim2 // 2 + 1, "modes2 exceeds output rfft width"
    assert Cin <= cin_p and Cout <= cout_p and M2 <= Mp

    # rfft2 with norm='forward' (scale 1/N on the forward transform).
    x_ft = jnp.fft.rfft2(x, norm="forward")          # (B, Cin, H, W//2+1) c64

    # --- pack x: gather both corners, flatten modes, sublane-dense stack ----
    top = x_ft[:, :, :modes1, :modes2].reshape(B, Cin, M)
    bot = x_ft[:, :, H - modes1:, :modes2].reshape(B, Cin, M)
    xc = jnp.concatenate([top, bot], axis=-1)                     # (B,Cin,2M)
    xr = jnp.pad(jnp.real(xc).astype(jnp.float32),
                 ((0, 0), (0, cin_p - Cin), (0, Mp - M2)))
    xi = jnp.pad(jnp.imag(xc).astype(jnp.float32),
                 ((0, 0), (0, cin_p - Cin), (0, Mp - M2)))
    x_stack = jnp.concatenate([xr, xi], axis=1)                   # (B,2Cin_p,Mp)

    # --- batch blocking: amortize ~0.35us/step while keeping >=2 grid steps
    #     so both v7x TensorCores get work.
    bb = min(8, max(1, B // 2)) if B >= 2 else 1
    Bp = _round_up(B, bb)
    if Bp != B:
        x_stack = jnp.pad(x_stack, ((0, Bp - B), (0, 0), (0, 0)))

    # --- mode (lane) tiling: largest 128-multiple divisor of Mp up to 512 ---
    mode_tile = math.gcd(Mp, 512)
    n_mt = Mp // mode_tile
    n_bb = Bp // bb

    # --- derive the VMEM budget from the actual tile plan (w is re-fetched
    #     only when the mode tile changes; x/out are double-buffered). -------
    w_bytes = cin_p * 2 * cout_p * mode_tile * w_stack.dtype.itemsize
    x_bytes = bb * 2 * cin_p * mode_tile * 4
    o_bytes = bb * 2 * cout_p * mode_tile * 4
    plan_bytes = 2 * (w_bytes + x_bytes + o_bytes)
    vmem_limit = int(min(max(2 * plan_bytes, 8 << 20), 48 << 20))  # v7x-safe

    # --- fused Pallas call: grid (mode_tiles, batch_blocks), batch innermost
    out = pl.pallas_call(
        _spectral_mix_kernel,
        out_shape=jax.ShapeDtypeStruct((Bp, 2 * cout_p, Mp), jnp.float32),
        grid_spec=pltpu.PrefetchScalarGridSpec(
            num_scalar_prefetch=0,
            grid=(n_mt, n_bb),
            in_specs=[
                # x: changes every (inner) batch step — sublane/lane dense tile
                pl.BlockSpec((bb, 2 * cin_p, mode_tile),
                             lambda mt, b: (b, 0, mt)),
                # weights: block index constant over the inner batch axis, so
                # the tile is fetched once per mode tile and stays resident.
                # TODO(synk): at production sizes add a Cout-tile grid axis and
                # single-buffer this spec (pipeline_mode=pl.Buffered(1)); at
                # these shapes the whole weight block is ~16 KiB so the
                # default double buffer is irrelevant.
                pl.BlockSpec((cin_p, 2 * cout_p, mode_tile),
                             lambda mt, b: (0, 0, mt)),
            ],
            out_specs=pl.BlockSpec((bb, 2 * cout_p, mode_tile),
                                   lambda mt, b: (b, 0, mt)),
        ),
        compiler_params=pltpu.CompilerParams(
            dimension_semantics=("parallel", "parallel"),
            vmem_limit_bytes=vmem_limit,
        ),
    )(x_stack, w_stack)

    # --- recombine into complex mode blocks ---------------------------------
    o_r = out[:B, :Cout, :M2]
    o_i = out[:B, cout_p:cout_p + Cout, :M2]
    oc = (o_r + 1j * o_i).astype(jnp.complex64).reshape(
        B, Cout, 2, modes1, modes2)
    top_o, bot_o = oc[:, :, 0], oc[:, :, 1]

    # Assemble the padded half-spectrum with a single concatenation
    # (avoids two full-buffer scatter copies of the complex64 buffer).
    Wr = dim2 // 2 + 1
    mid = jnp.zeros((B, Cout, dim1 - 2 * modes1, modes2), jnp.complex64)
    left = jnp.concatenate([top_o, mid, bot_o], axis=2)       # (B,Cout,dim1,m2)
    right = jnp.zeros((B, Cout, dim1, Wr - modes2), jnp.complex64)
    out_ft = jnp.concatenate([left, right], axis=3)           # (B,Cout,dim1,Wr)

    # irfft2 with norm='forward' (no scaling on the inverse).
    return jnp.fft.irfft2(out_ft, s=(dim1, dim2), norm="forward")


# Convenience wrapper matching the module's (x, weights1, weights2) signature.
def spectral_conv2d_uno(x, weights1, weights2, dim1, dim2, modes1, modes2):
    w_stack = pack_spectral_weights(weights1, weights2)
    return spectral_conv2d_uno_packed(
        x, w_stack, out_codim=weights1.shape[1],
        dim1=dim1, dim2=dim2, modes1=modes1, modes2=modes2)


# Pure-JAX reference (mirrors the PyTorch forward exactly).
def _reference(x, weights1, weights2, dim1, dim2, modes1, modes2):
    B, Cin, H, W = x.shape
    Cout = weights1.shape[1]
    x_ft = jnp.fft.rfft2(x, norm="forward")
    w1c = weights1[..., 0] + 1j * weights1[..., 1]
    w2c = weights2[..., 0] + 1j * weights2[..., 1]
    out_top = jnp.einsum("bixy,ioxy->boxy", x_ft[:, :, :modes1, :modes2], w1c)
    out_bot = jnp.einsum("bixy,ioxy->boxy", x_ft[:, :, H - modes1:, :modes2], w2c)
    out_ft = jnp.zeros((B, Cout, dim1, dim2 // 2 + 1), jnp.complex64)
    out_ft = out_ft.at[:, :, :modes1, :modes2].set(out_top)
    out_ft = out_ft.at[:, :, dim1 - modes1:, :modes2].set(out_bot)
    return jnp.fft.irfft2(out_ft, s=(dim1, dim2), norm="forward")


if __name__ == "__main__":
    # Module hyper-params (matching __init__ defaults):
    in_codim, out_codim = 4, 4
    dim1 = dim2 = 16
    modes1 = dim1 // 2 - 1          # 7
    modes2 = dim2 // 2              # 8

    key = jax.random.PRNGKey(0)
    kx, k1, k2 = jax.random.split(key, 3)

    scale = (1.0 / (2 * in_codim)) ** 0.5
    weights1 = scale * jax.random.normal(
        k1, (in_codim, out_codim, modes1, modes2, 2), dtype=jnp.float32)
    weights2 = scale * jax.random.normal(
        k2, (in_codim, out_codim, modes1, modes2, 2), dtype=jnp.float32)
    x = jax.random.normal(kx, (2, in_codim, 16, 16), dtype=jnp.float32)

    # Weight packing hoisted out of the per-step forward (once per update).
    w_stack = pack_spectral_weights(weights1, weights2)

    fwd = jax.jit(functools.partial(
        spectral_conv2d_uno_packed, out_codim=out_codim,
        dim1=dim1, dim2=dim2, modes1=modes1, modes2=modes2))

    out = jax.block_until_ready(fwd(x, w_stack))

    ref = _reference(x, weights1, weights2, dim1, dim2, modes1, modes2)
    assert out.shape == (2, out_codim, dim1, dim2)
    assert jnp.allclose(out, ref, atol=1e-4, rtol=1e-4), "mismatch vs reference"

    print("KERNEL_OK")
</pallas_src>

<mosaic_0001>
module attributes {stable_mosaic.version = 11 : i64} {
  func.func @_spectral_mix_kernel(%arg0: i32, %arg1: i32, %arg2: memref<1x8x128xf32, #tpu.memory_space<vmem>>, %arg3: memref<4x8x128xf32, #tpu.memory_space<vmem>>, %arg4: memref<1x8x128xf32, #tpu.memory_space<vmem>>) attributes {dimension_semantics = [#tpu.dimension_semantics<parallel>, #tpu.dimension_semantics<parallel>], iteration_bounds = array<i64: 1, 2>, scalar_prefetch = 0 : i64, scratch_operands = 0 : i64, tpu.core_type = #tpu.core_type<tc>, window_params = [{transform_indices = @transform_0, window_bounds = array<i64: 1, 8, 128>}, {transform_indices = @transform_1, window_bounds = array<i64: 4, 8, 128>}, {transform_indices = @transform_2, window_bounds = array<i64: 1, 8, 128>}]} {
    %c0 = arith.constant 0 : index
    %c0_0 = arith.constant 0 : index
    %c0_1 = arith.constant 0 : index
    %0 = vector.load %arg2[%c0, %c0_0, %c0_1] : memref<1x8x128xf32, #tpu.memory_space<vmem>>, vector<1x8x128xf32>
    %cst = arith.constant 0.000000e+00 : f32
    %1 = vector.broadcast %cst : f32 to vector<1x4x128xf32>
    %cst_2 = arith.constant 0.000000e+00 : f32
    %2 = vector.broadcast %cst_2 : f32 to vector<1x4x128xf32>
    %3 = vector.extract_strided_slice %0 {offsets = [0, 0, 0], sizes = [1, 1, 128], strides = [1, 1, 1]} : vector<1x8x128xf32> to vector<1x1x128xf32>
    %4 = vector.shape_cast %3 : vector<1x1x128xf32> to vector<1x1x128xf32>
    %5 = vector.broadcast %4 : vector<1x1x128xf32> to vector<1x4x128xf32>
    %6 = vector.extract_strided_slice %0 {offsets = [0, 4, 0], sizes = [1, 1, 128], strides = [1, 1, 1]} : vector<1x8x128xf32> to vector<1x1x128xf32>
    %7 = vector.shape_cast %6 : vector<1x1x128xf32> to vector<1x1x128xf32>
    %8 = vector.broadcast %7 : vector<1x1x128xf32> to vector<1x4x128xf32>
    %c0_3 = arith.constant 0 : index
    %c0_4 = arith.constant 0 : index
    %c0_5 = arith.constant 0 : index
    %9 = vector.load %arg3[%c0_3, %c0_4, %c0_5] : memref<4x8x128xf32, #tpu.memory_space<vmem>>, vector<1x4x128xf32>
    %10 = vector.shape_cast %9 : vector<1x4x128xf32> to vector<4x128xf32>
    %11 = vector.shape_cast %10 : vector<4x128xf32> to vector<1x4x128xf32>
    %c0_6 = arith.constant 0 : index
    %c4 = arith.constant 4 : index
    %c0_7 = arith.constant 0 : index
    %12 = vector.load %arg3[%c0_6, %c4, %c0_7] : memref<4x8x128xf32, #tpu.memory_space<vmem>>, vector<1x4x128xf32>
    %13 = vector.shape_cast %12 : vector<1x4x128xf32> to vector<4x128xf32>
    %14 = vector.shape_cast %13 : vector<4x128xf32> to vector<1x4x128xf32>
    %15 = arith.mulf %5, %11 : vector<1x4x128xf32>
    %16 = arith.mulf %8, %14 : vector<1x4x128xf32>
    %17 = arith.subf %15, %16 : vector<1x4x128xf32>
    %18 = arith.addf %1, %17 : vector<1x4x128xf32>
    %19 = arith.mulf %5, %14 : vector<1x4x128xf32>
    %20 = arith.mulf %8, %11 : vector<1x4x128xf32>
    %21 = arith.addf %19, %20 : vector<1x4x128xf32>
    %22 = arith.addf %2, %21 : vector<1x4x128xf32>
    %23 = vector.extract_strided_slice %0 {offsets = [0, 1, 0], sizes = [1, 1, 128], strides = [1, 1, 1]} : vector<1x8x128xf32> to vector<1x1x128xf32>
    %24 = vector.shape_cast %23 : vector<1x1x128xf32> to vector<1x1x128xf32>
    %25 = vector.broadcast %24 : vector<1x1x128xf32> to vector<1x4x128xf32>
    %26 = vector.extract_strided_slice %0 {offsets = [0, 5, 0], sizes = [1, 1, 128], strides = [1, 1, 1]} : vector<1x8x128xf32> to vector<1x1x128xf32>
    %27 = vector.shape_cast %26 : vector<1x1x128xf32> to vector<1x1x128xf32>
    %28 = vector.broadcast %27 : vector<1x1x128xf32> to vector<1x4x128xf32>
    %c1 = arith.constant 1 : index
    %c0_8 = arith.constant 0 : index
    %c0_9 = arith.constant 0 : index
    %29 = vector.load %arg3[%c1, %c0_8, %c0_9] : memref<4x8x128xf32, #tpu.memory_space<vmem>>, vector<1x4x128xf32>
    %30 = vector.shape_cast %29 : vector<1x4x128xf32> to vector<4x128xf32>
    %31 = vector.shape_cast %30 : vector<4x128xf32> to vector<1x4x128xf32>
    %c1_10 = arith.constant 1 : index
    %c4_11 = arith.constant 4 : index
    %c0_12 = arith.constant 0 : index
    %32 = vector.load %arg3[%c1_10, %c4_11, %c0_12] : memref<4x8x128xf32, #tpu.memory_space<vmem>>, vector<1x4x128xf32>
    %33 = vector.shape_cast %32 : vector<1x4x128xf32> to vector<4x128xf32>
    %34 = vector.shape_cast %33 : vector<4x128xf32> to vector<1x4x128xf32>
    %35 = arith.mulf %25, %31 : vector<1x4x128xf32>
    %36 = arith.mulf %28, %34 : vector<1x4x128xf32>
    %37 = arith.subf %35, %36 : vector<1x4x128xf32>
    %38 = arith.addf %18, %37 : vector<1x4x128xf32>
    %39 = arith.mulf %25, %34 : vector<1x4x128xf32>
    %40 = arith.mulf %28, %31 : vector<1x4x128xf32>
    %41 = arith.addf %39, %40 : vector<1x4x128xf32>
    %42 = arith.addf %22, %41 : vector<1x4x128xf32>
    %43 = vector.extract_strided_slice %0 {offsets = [0, 2, 0], sizes = [1, 1, 128], strides = [1, 1, 1]} : vector<1x8x128xf32> to vector<1x1x128xf32>
    %44 = vector.shape_cast %43 : vector<1x1x128xf32> to vector<1x1x128xf32>
    %45 = vector.broadcast %44 : vector<1x1x128xf32> to vector<1x4x128xf32>
    %46 = vector.extract_strided_slice %0 {offsets = [0, 6, 0], sizes = [1, 1, 128], strides = [1, 1, 1]} : vector<1x8x128xf32> to vector<1x1x128xf32>
    %47 = vector.shape_cast %46 : vector<1x1x128xf32> to vector<1x1x128xf32>
    %48 = vector.broadcast %47 : vector<1x1x128xf32> to vector<1x4x128xf32>
    %c2 = arith.constant 2 : index
    %c0_13 = arith.constant 0 : index
    %c0_14 = arith.constant 0 : index
    %49 = vector.load %arg3[%c2, %c0_13, %c0_14] : memref<4x8x128xf32, #tpu.memory_space<vmem>>, vector<1x4x128xf32>
    %50 = vector.shape_cast %49 : vector<1x4x128xf32> to vector<4x128xf32>
    %51 = vector.shape_cast %50 : vector<4x128xf32> to vector<1x4x128xf32>
    %c2_15 = arith.constant 2 : index
    %c4_16 = arith.constant 4 : index
    %c0_17 = arith.constant 0 : index
    %52 = vector.load %arg3[%c2_15, %c4_16, %c0_17] : memref<4x8x128xf32, #tpu.memory_space<vmem>>, vector<1x4x128xf32>
    %53 = vector.shape_cast %52 : vector<1x4x128xf32> to vector<4x128xf32>
    %54 = vector.shape_cast %53 : vector<4x128xf32> to vector<1x4x128xf32>
    %55 = arith.mulf %45, %51 : vector<1x4x128xf32>
    %56 = arith.mulf %48, %54 : vector<1x4x128xf32>
    %57 = arith.subf %55, %56 : vector<1x4x128xf32>
    %58 = arith.addf %38, %57 : vector<1x4x128xf32>
    %59 = arith.mulf %45, %54 : vector<1x4x128xf32>
    %60 = arith.mulf %48, %51 : vector<1x4x128xf32>
    %61 = arith.addf %59, %60 : vector<1x4x128xf32>
    %62 = arith.addf %42, %61 : vector<1x4x128xf32>
    %63 = vector.extract_strided_slice %0 {offsets = [0, 3, 0], sizes = [1, 1, 128], strides = [1, 1, 1]} : vector<1x8x128xf32> to vector<1x1x128xf32>
    %64 = vector.shape_cast %63 : vector<1x1x128xf32> to vector<1x1x128xf32>
    %65 = vector.broadcast %64 : vector<1x1x128xf32> to vector<1x4x128xf32>
    %66 = vector.extract_strided_slice %0 {offsets = [0, 7, 0], sizes = [1, 1, 128], strides = [1, 1, 1]} : vector<1x8x128xf32> to vector<1x1x128xf32>
    %67 = vector.shape_cast %66 : vector<1x1x128xf32> to vector<1x1x128xf32>
    %68 = vector.broadcast %67 : vector<1x1x128xf32> to vector<1x4x128xf32>
    %c3 = arith.constant 3 : index
    %c0_18 = arith.constant 0 : index
    %c0_19 = arith.constant 0 : index
    %69 = vector.load %arg3[%c3, %c0_18, %c0_19] : memref<4x8x128xf32, #tpu.memory_space<vmem>>, vector<1x4x128xf32>
    %70 = vector.shape_cast %69 : vector<1x4x128xf32> to vector<4x128xf32>
    %71 = vector.shape_cast %70 : vector<4x128xf32> to vector<1x4x128xf32>
    %c3_20 = arith.constant 3 : index
    %c4_21 = arith.constant 4 : index
    %c0_22 = arith.constant 0 : index
    %72 = vector.load %arg3[%c3_20, %c4_21, %c0_22] : memref<4x8x128xf32, #tpu.memory_space<vmem>>, vector<1x4x128xf32>
    %73 = vector.shape_cast %72 : vector<1x4x128xf32> to vector<4x128xf32>
    %74 = vector.shape_cast %73 : vector<4x128xf32> to vector<1x4x128xf32>
    %75 = arith.mulf %65, %71 : vector<1x4x128xf32>
    %76 = arith.mulf %68, %74 : vector<1x4x128xf32>
    %77 = arith.subf %75, %76 : vector<1x4x128xf32>
    %78 = arith.addf %58, %77 : vector<1x4x128xf32>
    %79 = arith.mulf %65, %74 : vector<1x4x128xf32>
    %80 = arith.mulf %68, %71 : vector<1x4x128xf32>
    %81 = arith.addf %79, %80 : vector<1x4x128xf32>
    %82 = arith.addf %62, %81 : vector<1x4x128xf32>
    %83 = tpu.concatenate %78, %82 in 1 : vector<1x4x128xf32>, vector<1x4x128xf32> -> vector<1x8x128xf32>
    %c0_23 = arith.constant 0 : index
    %c0_24 = arith.constant 0 : index
    %c0_25 = arith.constant 0 : index
    %84 = vector.load %arg4[%c0_23, %c0_24, %c0_25] : memref<1x8x128xf32, #tpu.memory_space<vmem>>, vector<1x8x128xf32>
    tpu.vector_store %arg4[%c0_23, %c0_24, %c0_25], %83 {strides = array<i32>} : memref<1x8x128xf32, #tpu.memory_space<vmem>>, vector<1x8x128xf32>,
    return
  }
  func.func @transform_0(%arg0: i32, %arg1: i32) -> (i32, i32, i32) {
    %c0_i32 = arith.constant 0 : i32
    %c0_i32_0 = arith.constant 0 : i32
    return %arg1, %c0_i32, %arg0 : i32, i32, i32
  }
  func.func @transform_1(%arg0: i32, %arg1: i32) -> (i32, i32, i32) {
    %c0_i32 = arith.constant 0 : i32
    %c0_i32_0 = arith.constant 0 : i32
    %c0_i32_1 = arith.constant 0 : i32
    return %c0_i32, %c0_i32_0, %arg0 : i32, i32, i32
  }
  func.func @transform_2(%arg0: i32, %arg1: i32) -> (i32, i32, i32) {
    %c0_i32 = arith.constant 0 : i32
    %c0_i32_0 = arith.constant 0 : i32
    return %arg1, %c0_i32, %arg0 : i32, i32, i32
  }
}

</mosaic_0001>

<llo_original>
// kernel: spectral_conv2d_uno_packed.1
$region0: #{spectral_conv2d_uno_packed.1}
  #allocation0 [shape = 'u32[]', space=smem, size = 0x4, offset = 0x4, fixed_abs, tag = 'smem constant byte address 0x4 - core index']
  #allocation1 [shape = 'u32[72,128]{1,0:T(1,128)}', space=vmem, size = 0x9000, scoped, tag = 'internal scratch']
  %s0 = inlined_call_operand.vmem [shape: f32[2,8,128], index: 0, kind: input, shape index: {}]
  %s1 = inlined_call_operand.vmem [shape: f32[4,8,128], index: 1, kind: input, shape index: {}]
  %s2 = inlined_call_operand.vmem [shape: f32[2,8,128], index: 2, kind: output, shape index: {}]
  %s3 = sld [smem:[#allocation0]]
  $region41: #{spectral_conv2d_uno_packed.1} parent=0
    _
  %s5 = ssub.s32 1, %s3
  %s6 = scalar_select 0, %s5, %s3
  loop: start=0, step=1, limit=4
  $region2: #{spectral_conv2d_uno_packed.1} parent=0 // loop_pre_header
    _
  $region3: #{spectral_conv2d_uno_packed.1} parent=0 // loop_header
    %s8 = sphi 0, %s12
    %p9 = scmp.ge.s32.totalorder %s8, 4
    %s15 = sphi 0, %s27
    %s16 = sphi 0, %s23
    %s17 = sphi 0, %s15
    %s18 = sphi 0, %s16
    %s19 = sphi 0, %s17
    %s20 = sphi 0, %s18
    %s32 = sphi 0, %s34
    %s35 = sphi 0, %s32
    %s36 = sphi 0, %s35
    %s52 = sphi 0, %s36
    %s58 = sphi 0, %s60
    %s61 = sphi 0, %s58
    %s62 = sphi 0, %s61
    %s78 = sphi 0, %s62
    %s86 = sphi 0, %s88
    %s89 = sphi 0, %s86
    %s90 = sphi 0, %s89
    %s106 = sphi 0, %s90
  $region4: #{spectral_conv2d_uno_packed.1} parent=0 // loop_header_branch
    %11 = sbr.rel (%p9) target = $region8
  $region5: #{spectral_conv2d_uno_packed.1} parent=0 // loop_body
    %s13 = ssub.s32 %s8, 1
    %s14 = ssub.s32 %s8, 2
    %s21 = sadd.s32 1, %s16
    %p22 = scmp.ge.s32.totalorder %s21, 2
    %s23 = scalar_select %p22, 0, %s21
    %s24 = sadd.s32 1, %s15
    %s25 = scalar_select %p22, %s24, %s15
    %p26 = scmp.ge.s32.totalorder %s25, 1
    %s27 = scalar_select %p26, 0, %s25
    %s28 = ssub.s32 %s16, %s23
    %s29 = ssub.s32 %s15, %s27
    %s30 = sor.u32 %s28, %s29
    %p31 = scmp.eq.s32.totalorder %s30, 0
    %s33 = sadd.s32 %s32, 1
    %s34 = scalar_select %p31, %s32, %s33
    %p37 = pneg %p31
    %p38 = scmp.eq.s32.totalorder %s8, 1
    %p39 = por %p37, %p38
    %p40 = scmp.ne.s32.totalorder %s32, %s35
    %p41 = scmp.eq.s32.totalorder %s8, 0
    %p42 = por %p40, %p41
    %p43 = scmp.ne.s32.totalorder %s32, %s35
    %p44 = scmp.eq.s32.totalorder %s13, 1
    %p45 = por %p43, %p44
    %p46 = scmp.ne.s32.totalorder %s35, %s36
    %p47 = scmp.eq.s32.totalorder %s13, 0
    %p48 = por %p46, %p47
    %p49 = scmp.ne.s32.totalorder %s35, %s36
    %p50 = scmp.eq.s32.totalorder %s14, 1
    %p51 = por %p49, %p50
    %p53 = scmp.ne.s32.totalorder %s36, %s52
    %p54 = scmp.eq.s32.totalorder %s14, 0
    %p55 = por %p53, %p54
    %s56 = ssub.s32 %s15, %s27
    %p57 = scmp.eq.s32.totalorder %s56, 0
    %s59 = sadd.s32 %s58, 1
    %s60 = scalar_select %p57, %s58, %s59
    %p63 = pneg %p57
    %p64 = scmp.eq.s32.totalorder %s8, 1
    %p65 = por %p63, %p64
    %p66 = scmp.ne.s32.totalorder %s58, %s61
    %p67 = scmp.eq.s32.totalorder %s8, 0
    %p68 = por %p66, %p67
    %p69 = scmp.ne.s32.totalorder %s58, %s61
    %p70 = scmp.eq.s32.totalorder %s13, 1
    %p71 = por %p69, %p70
    %p72 = scmp.ne.s32.totalorder %s61, %s62
    %p73 = scmp.eq.s32.totalorder %s13, 0
    %p74 = por %p72, %p73
    %p75 = scmp.ne.s32.totalorder %s61, %s62
    %p76 = scmp.eq.s32.totalorder %s14, 1
    %p77 = por %p75, %p76
    %p79 = scmp.ne.s32.totalorder %s62, %s78
    %p80 = scmp.eq.s32.totalorder %s14, 0
    %p81 = por %p79, %p80
    %s82 = ssub.s32 %s16, %s23
    %s83 = ssub.s32 %s15, %s27
    %s84 = sor.u32 %s82, %s83
    %p85 = scmp.eq.s32.totalorder %s84, 0
    %s87 = sadd.s32 %s86, 1
    %s88 = scalar_select %p85, %s86, %s87
    %p91 = pneg %p85
    %p92 = scmp.eq.s32.totalorder %s8, 1
    %p93 = por %p91, %p92
    %p94 = scmp.ne.s32.totalorder %s86, %s89
    %p95 = scmp.eq.s32.totalorder %s8, 0
    %p96 = por %p94, %p95
    %p97 = scmp.ne.s32.totalorder %s86, %s89
    %p98 = scmp.eq.s32.totalorder %s13, 1
    %p99 = por %p97, %p98
    %p100 = scmp.ne.s32.totalorder %s89, %s90
    %p101 = scmp.eq.s32.totalorder %s13, 0
    %p102 = por %p100, %p101
    %p103 = scmp.ne.s32.totalorder %s89, %s90
    %p104 = scmp.eq.s32.totalorder %s14, 1
    %p105 = por %p103, %p104
    %p107 = scmp.ne.s32.totalorder %s90, %s106
    %p108 = scmp.eq.s32.totalorder %s14, 0
    %p109 = por %p107, %p108
    %p110 = scmp.le.s32.totalorder 1, %s8
    %p111 = scmp.lt.s32.totalorder %s8, 3
    %p112 = pnand %p110, %p111
    %p113 = pneg %p112
    // Predicated region
    $region9: #{spectral_conv2d_uno_packed.1} parent=5 // pred_check
      _
    $region10: #{spectral_conv2d_uno_packed.1} parent=5 // pred_check_branch
      %115 = sbr.rel (%p112) target = $region12
    $region11: #{spectral_conv2d_uno_packed.1} parent=5 // pred_region
      %s116 = ssub.s32 %s8, 1
      // Predicated region
      $region13: #{spectral_conv2d_uno_packed.1} parent=11 // pred_check
        %p117 = pneg %p74
      $region14: #{spectral_conv2d_uno_packed.1} parent=11 // pred_check_branch
        %119 = sbr.rel (%p117) target = $region16
      $region15: #{spectral_conv2d_uno_packed.1} parent=11 // pred_region
        %p120 = scmp.lt.s32.totalorder %s17, 0
        %s121 = scalar_select %p120, %s17, 0
        %s122 = smul.addr %s121, 8
        %s123 = scalar_lea.vmem %s1, %s122
      $region16: #{spectral_conv2d_uno_packed.1} parent=11 // pred_fallthru
        _
    $region12: #{spectral_conv2d_uno_packed.1} parent=5 // pred_fallthru
      _
    %p124 = scmp.lt.s32.totalorder %s8, 2
    // Predicated region
    $region17: #{spectral_conv2d_uno_packed.1} parent=5 // pred_check
      %p125 = pneg %p124
    $region18: #{spectral_conv2d_uno_packed.1} parent=5 // pred_check_branch
      %127 = sbr.rel (%p125) target = $region20
    $region19: #{spectral_conv2d_uno_packed.1} parent=5 // pred_region
      // Predicated region
      $region21: #{spectral_conv2d_uno_packed.1} parent=19 // pred_check
        %p128 = pneg %p42
      $region22: #{spectral_conv2d_uno_packed.1} parent=19 // pred_check_branch
        %130 = sbr.rel (%p128) target = $region24
      $region23: #{spectral_conv2d_uno_packed.1} parent=19 // pred_region
        %p131 = scmp.lt.s32.totalorder %s16, 1
        %s132 = scalar_select %p131, %s16, 1
        %p133 = scmp.lt.s32.totalorder %s15, 0
        %s134 = scalar_select %p133, %s15, 0
        %s135 = sadd.s32 %s134, %s132
        %s136 = smul.addr %s135, 8
        %s137 = scalar_lea.vmem %s0, %s136
      $region24: #{spectral_conv2d_uno_packed.1} parent=19 // pred_fallthru
        _
    $region20: #{spectral_conv2d_uno_packed.1} parent=5 // pred_fallthru
      _
    %p138 = scmp.le.s32.totalorder 1, %s8
    %p139 = scmp.lt.s32.totalorder %s8, 3
    %p140 = pnand %p138, %p139
    %p141 = pneg %p140
    // Predicated region
    $region25: #{spectral_conv2d_uno_packed.1} parent=5 // pred_check
      _
    $region26: #{spectral_conv2d_uno_packed.1} parent=5 // pred_check_branch
      %143 = sbr.rel (%p140) target = $region28
    $region27: #{spectral_conv2d_uno_packed.1} parent=5 // pred_region
      %s144 = ssub.s32 %s8, 1
      %p145 = scmp.lt.s32.totalorder %s18, 1
      %s146 = scalar_select %p145, %s18, 1
      %p147 = scmp.lt.s32.totalorder %s17, 0
      %s148 = scalar_select %p147, %s17, 0
      %s149 = sadd.s32 %s148, %s146
      %s150 = smul.addr %s149, 8
      %s151 = scalar_lea.vmem %s0, %s150
      %p152 = pneg %p48
      %p153 = pneg %p45
      %p154 = scmp.lt.s32.totalorder %s17, 0
      %s155 = scalar_select %p154, %s17, 0
      %s156 = smul.addr %s155, 8
      %s157 = scalar_lea.vmem %s1, %s156
      %p158 = pneg %p74
      %p159 = pneg %p71
      %p160 = pneg %p102
      %p161 = pneg %p99
      %p162 = scmp.lt.s32.totalorder %s18, 1
      %s163 = scalar_select %p162, %s18, 1
      %p164 = scmp.lt.s32.totalorder %s17, 0
      %s165 = scalar_select %p164, %s17, 0
      %s166 = sadd.s32 %s165, %s163
      %s167 = smul.addr %s166, 8
      %s168 = scalar_lea.vmem %s2, %s167
      %p169 = scmp.lt.s32.totalorder %s18, 1
      %s170 = scalar_select %p169, %s18, 1
      %p171 = scmp.lt.s32.totalorder %s17, 0
      %s172 = scalar_select %p171, %s17, 0
      %s173 = sadd.s32 %s172, %s170
      %s174 = smul.addr %s173, 8
      %s175 = scalar_lea.vmem %s0, %s174
      %p176 = scmp.lt.s32.totalorder %s17, 0
      %s177 = scalar_select %p176, %s17, 0
      %s178 = smul.addr %s177, 8
      %s179 = scalar_lea.vmem %s1, %s178
      %p180 = scmp.lt.s32.totalorder %s18, 1
      %s181 = scalar_select %p180, %s18, 1
      %p182 = scmp.lt.s32.totalorder %s17, 0
      %s183 = scalar_select %p182, %s17, 0
      %s184 = sadd.s32 %s183, %s181
      %s185 = smul.addr %s184, 8
      %s186 = scalar_lea.vmem %s2, %s185
      %v187 = vld [vmem:[%s175] sm:$0xff]
      %v188 = vperm.slane %v187, 0
      %v189 = vperm.slane %v187, 4
      %v190 = vld [vmem:[%s179] sm:$0xf]
      %v191 = vld [vmem:[%s179 + $0x4] sm:$0xf]
      %v192 = vmul.f32 %v188, %v190
      %v193 = vmul.f32 %v189, %v191
      %v194 = vsub.f32 %v192, %v193
      %v195 = vadd.f32 %v194, 0.0
      %v196 = vmul.f32 %v188, %v191
      %v197 = vmul.f32 %v189, %v190
      %v198 = vadd.f32 %v196, %v197
      %v199 = vadd.f32 %v198, 0.0
      %v200 = vperm.slane %v187, 1
      %v201 = vperm.slane %v187, 5
      %s202 = scalar_lea.vmem %s179, 8
      %v203 = vld [vmem:[%s202] sm:$0xf]
      %v204 = vld [vmem:[%s202 + $0x4] sm:$0xf]
      %v205 = vmul.f32 %v200, %v203
      %v206 = vmul.f32 %v201, %v204
      %v207 = vsub.f32 %v205, %v206
      %v208 = vadd.f32 %v195, %v207
      %v209 = vmul.f32 %v200, %v204
      %v210 = vmul.f32 %v201, %v203
      %v211 = vadd.f32 %v209, %v210
      %v212 = vadd.f32 %v199, %v211
      %v213 = vperm.slane %v187, 2
      %v214 = vperm.slane %v187, 6
      %s215 = scalar_lea.vmem %s179, 16
      %v216 = vld [vmem:[%s215] sm:$0xf]
      %v217 = vld [vmem:[%s215 + $0x4] sm:$0xf]
      %v218 = vmul.f32 %v213, %v216
      %v219 = vmul.f32 %v214, %v217
      %v220 = vsub.f32 %v218, %v219
      %v221 = vadd.f32 %v208, %v220
      %v222 = vmul.f32 %v213, %v217
      %v223 = vmul.f32 %v214, %v216
      %v224 = vadd.f32 %v222, %v223
      %v225 = vadd.f32 %v212, %v224
      %v226 = vperm.slane %v187, 3
      %v227 = vperm.slane %v187, 7
      %s228 = scalar_lea.vmem %s179, 24
      %v229 = vld [vmem:[%s228] sm:$0xf]
      %v230 = vld [vmem:[%s228 + $0x4] sm:$0xf]
      %v231 = vmul.f32 %v226, %v229
      %v232 = vmul.f32 %v227, %v230
      %v233 = vsub.f32 %v231, %v232
      %v234 = vadd.f32 %v221, %v233
      %v235 = vmul.f32 %v226, %v230
      %v236 = vmul.f32 %v227, %v229
      %v237 = vadd.f32 %v235, %v236
      %v238 = vadd.f32 %v225, %v237
      %v240 = vrot.slane %v238, 4
      %vm242 = vcmask 1043456
      %v243 = vsel %vm242, %v234, %v240
      %244 = vst [vmem:[%s186] sm:$0xff] %v243
      %p245 = scmp.lt.s32.totalorder %s18, 1
      %s246 = scalar_select %p245, %s18, 1
      %p247 = scmp.lt.s32.totalorder %s17, 0
      %s248 = scalar_select %p247, %s17, 0
      %s249 = sadd.s32 %s248, %s246
      %s250 = smul.addr %s249, 8
      %s251 = scalar_lea.vmem %s2, %s250
      // Predicated region
      $region29: #{spectral_conv2d_uno_packed.1} parent=27 // pred_check
        %p252 = pneg %p99
      $region30: #{spectral_conv2d_uno_packed.1} parent=27 // pred_check_branch
        %254 = sbr.rel (%p252) target = $region32
      $region31: #{spectral_conv2d_uno_packed.1} parent=27 // pred_region
        _
      $region32: #{spectral_conv2d_uno_packed.1} parent=27 // pred_fallthru
        _
    $region28: #{spectral_conv2d_uno_packed.1} parent=5 // pred_fallthru
      _
    %p255 = scmp.le.s32.totalorder 2, %s8
    // Predicated region
    $region33: #{spectral_conv2d_uno_packed.1} parent=5 // pred_check
      %p256 = pneg %p255
    $region34: #{spectral_conv2d_uno_packed.1} parent=5 // pred_check_branch
      %258 = sbr.rel (%p256) target = $region36
    $region35: #{spectral_conv2d_uno_packed.1} parent=5 // pred_region
      %s259 = ssub.s32 %s8, 2
      // Predicated region
      $region37: #{spectral_conv2d_uno_packed.1} parent=35 // pred_check
        %p260 = pneg %p105
      $region38: #{spectral_conv2d_uno_packed.1} parent=35 // pred_check_branch
        %262 = sbr.rel (%p260) target = $region40
      $region39: #{spectral_conv2d_uno_packed.1} parent=35 // pred_region
        %p263 = scmp.lt.s32.totalorder %s20, 1
        %s264 = scalar_select %p263, %s20, 1
        %p265 = scmp.lt.s32.totalorder %s19, 0
        %s266 = scalar_select %p265, %s19, 0
        %s267 = sadd.s32 %s266, %s264
        %s268 = smul.addr %s267, 8
        %s269 = scalar_lea.vmem %s2, %s268
      $region40: #{spectral_conv2d_uno_packed.1} parent=35 // pred_fallthru
        _
    $region36: #{spectral_conv2d_uno_packed.1} parent=5 // pred_fallthru
      _
  $region6: #{spectral_conv2d_uno_packed.1} parent=0 // loop_footer
    %s12 = sadd.s32 1, %s8
  $region7: #{spectral_conv2d_uno_packed.1} parent=0 // loop_footer_branch
    %7 = sbr.rel target = $region3
  $region8: #{spectral_conv2d_uno_packed.1} parent=0 // loop_exit
    _

// kernel: reverse.0
$region0: #{reverse.0}
  %s0 = inlined_call_operand.vmem [shape: f32[2,4,16,7], index: 0, kind: input, shape index: {}]
  %s1 = inlined_call_operand.vmem [shape: f32[2,4,16,7], index: 1, kind: output, shape index: {}]
  $region1: #{reverse.0} parent=0
    #allocation0 [shape = 'u8[65536]{0}', space=vmem, size = 0x10000, scoped, tag = 'operand span for operand 0']
    #allocation1 [shape = 'u8[32768]{0}', space=vmem, size = 0x8000, scoped, tag = 'operand span for operand 1']
    %s2 = scalar_lea.vmem [#allocation0], 8
    // Predicated region
    $region2: #{reverse.0} parent=1 // pred_check
      _
    $region3: #{reverse.0} parent=1 // pred_check_branch
      %4 = sbr.rel (0) target = $region5
    $region4: #{reverse.0} parent=1 // pred_region
      // Predicated region
      $region6: #{reverse.0} parent=4 // pred_check
        _
      $region7: #{reverse.0} parent=4 // pred_check_branch
        %6 = sbr.rel (0) target = $region9
      $region8: #{reverse.0} parent=4 // pred_region
        // Predicated region
        $region21: #{reverse.0} parent=8 // pred_check
          _
        $region22: #{reverse.0} parent=8 // pred_check_branch
          %36 = sbr.rel (0) target = $region24
        $region23: #{reverse.0} parent=8 // pred_region
          loop: start=0, step=1, limit=1
          $region25: #{reverse.0} parent=23 // loop_pre_header
            _
          $region26: #{reverse.0} parent=23 // loop_header
            %s38 = sphi 0, %s42
            %p39 = scmp.ge.s32.totalorder %s38, 1
            %s43 = sphi %s0, %s0
            %s44 = sphi %s2, %s2
          $region27: #{reverse.0} parent=23 // loop_header_branch
            %41 = sbr.rel (%p39) target = $region31
          $region28: #{reverse.0} parent=23 // loop_body
            %v45 = vld [vmem:[%s43] sm:$0xff]
            %46 = vst [vmem:[%s44] sm:$0xff] %v45
            %v47 = vld [vmem:[%s43 + $0x8] sm:$0xff]
            %48 = vst [vmem:[%s44 + $0x10] sm:$0xff] %v47
            %v49 = vld [vmem:[%s43 + $0x10] sm:$0xff]
            %50 = vst [vmem:[%s44 + $0x20] sm:$0xff] %v49
            %v51 = vld [vmem:[%s43 + $0x18] sm:$0xff]
            %52 = vst [vmem:[%s44 + $0x30] sm:$0xff] %v51
            %v53 = vld [vmem:[%s43 + $0x20] sm:$0xff]
            %54 = vst [vmem:[%s44 + $0x40] sm:$0xff] %v53
            %v55 = vld [vmem:[%s43 + $0x28] sm:$0xff]
            %56 = vst [vmem:[%s44 + $0x50] sm:$0xff] %v55
            %v57 = vld [vmem:[%s43 + $0x30] sm:$0xff]
            %58 = vst [vmem:[%s44 + $0x60] sm:$0xff] %v57
            %v59 = vld [vmem:[%s43 + $0x38] sm:$0xff]
            %60 = vst [vmem:[%s44 + $0x70] sm:$0xff] %v59
          $region29: #{reverse.0} parent=23 // loop_footer
            %s42 = sadd.s32 1, %s38
          $region30: #{reverse.0} parent=23 // loop_footer_branch
            %37 = sbr.rel target = $region26
          $region31: #{reverse.0} parent=23 // loop_exit
            _
        $region24: #{reverse.0} parent=8 // pred_fallthru
          _
        // Predicated region
        $region32: #{reverse.0} parent=8 // pred_check
          _
        $region33: #{reverse.0} parent=8 // pred_check_branch
          %62 = sbr.rel target = $region35
        $region34: #{reverse.0} parent=8 // pred_region
          _
        $region35: #{reverse.0} parent=8 // pred_fallthru
          _
      $region9: #{reverse.0} parent=4 // pred_fallthru
        _
      // Predicated region
      $region10: #{reverse.0} parent=4 // pred_check
        _
      $region11: #{reverse.0} parent=4 // pred_check_branch
        %8 = sbr.rel target = $region13
      $region12: #{reverse.0} parent=4 // pred_region
        %s10 = ssub.s32 256, 1
        loop: start=0, step=1, limit=1
        $region14: #{reverse.0} parent=12 // loop_pre_header
          _
        $region15: #{reverse.0} parent=12 // loop_header
          %s12 = sphi 0, %s16
          %p13 = scmp.ge.s32.totalorder %s12, 1
          %s17 = sphi %s0, %s0
          %s18 = sphi %s2, %s2
        $region16: #{reverse.0} parent=12 // loop_header_branch
          %15 = sbr.rel (%p13) target = $region20
        $region17: #{reverse.0} parent=12 // loop_body
          %v19 = vld [vmem:[%s17] sm:%s10]
          %20 = vst [vmem:[%s18] sm:%s10] %v19
          %v21 = vld [vmem:[%s17 + $0x8] sm:%s10]
          %22 = vst [vmem:[%s18 + $0x10] sm:%s10] %v21
          %v23 = vld [vmem:[%s17 + $0x10] sm:%s10]
          %24 = vst [vmem:[%s18 + $0x20] sm:%s10] %v23
          %v25 = vld [vmem:[%s17 + $0x18] sm:%s10]
          %26 = vst [vmem:[%s18 + $0x30] sm:%s10] %v25
          %v27 = vld [vmem:[%s17 + $0x20] sm:%s10]
          %28 = vst [vmem:[%s18 + $0x40] sm:%s10] %v27
          %v29 = vld [vmem:[%s17 + $0x28] sm:%s10]
          %30 = vst [vmem:[%s18 + $0x50] sm:%s10] %v29
          %v31 = vld [vmem:[%s17 + $0x30] sm:%s10]
          %32 = vst [vmem:[%s18 + $0x60] sm:%s10] %v31
          %v33 = vld [vmem:[%s17 + $0x38] sm:%s10]
          %34 = vst [vmem:[%s18 + $0x70] sm:%s10] %v33
        $region18: #{reverse.0} parent=12 // loop_footer
          %s16 = sadd.s32 1, %s12
        $region19: #{reverse.0} parent=12 // loop_footer_branch
          %11 = sbr.rel target = $region15
        $region20: #{reverse.0} parent=12 // loop_exit
          _
      $region13: #{reverse.0} parent=4 // pred_fallthru
        _
    $region5: #{reverse.0} parent=1 // pred_fallthru
      _
    %63 = vnop
    %s64 = scalar_lea.vmem [#allocation0], 7
    %v65 = vld [vmem:[%s64] ss:$-1 sm:$0xff]
    %v66 = vrot.slane %v65, 1
    %67 = vst [vmem:[#allocation1] sm:$0xff] %v66
    %s68 = scalar_lea.vmem [#allocation0], 8
    %s69 = scalar_lea.vmem %s68, 7 [#allocation0]
    %v70 = vld [vmem:[%s69] ss:$-1 sm:$0xff]
    %v71 = vrot.slane %v70, 1
    %v72 = vlaneseq
    %v73 = vshrl.u32 %v72, 7
    %vm74 = vcmp.lt.s32.totalorder %v73, 7
    %75 = vst.msk [vmem:[#allocation1] sm:$0xff] %vm74, %v71
    %s76 = scalar_lea.vmem [#allocation1], 8
    %s77 = scalar_lea.vmem [#allocation0], 16
    %s78 = scalar_lea.vmem %s77, 7 [#allocation0]
    %v79 = vld [vmem:[%s78] ss:$-1 sm:$0xff]
    %v80 = vrot.slane %v79, 1
    %81 = vst [vmem:[%s76] sm:$0xff] %v80
    %s82 = scalar_lea.vmem %s77, 8 [#allocation0]
    %s83 = scalar_lea.vmem %s82, 7 [#allocation0]
    %v84 = vld [vmem:[%s83] ss:$-1 sm:$0xff]
    %v85 = vrot.slane %v84, 1
    %v86 = vlaneseq
    %v87 = vshrl.u32 %v86, 7
    %vm88 = vcmp.lt.s32.totalorder %v87, 7
    %89 = vst.msk [vmem:[%s76] sm:$0xff] %vm88, %v85
    %s90 = scalar_lea.vmem [#allocation1], 16
    %s91 = scalar_lea.vmem [#allocation0], 32
    %s92 = scalar_lea.vmem %s91, 7 [#allocation0]
    %v93 = vld [vmem:[%s92] ss:$-1 sm:$0xff]
    %v94 = vrot.slane %v93, 1
    %95 = vst [vmem:[%s90] sm:$0xff] %v94
    %s96 = scalar_lea.vmem %s91, 8 [#allocation0]
    %s97 = scalar_lea.vmem %s96, 7 [#allocation0]
    %v98 = vld [vmem:[%s97] ss:$-1 sm:$0xff]
    %v99 = vrot.slane %v98, 1
    %v100 = vlaneseq
    %v101 = vshrl.u32 %v100, 7
    %vm102 = vcmp.lt.s32.totalorder %v101, 7
    %103 = vst.msk [vmem:[%s90] sm:$0xff] %vm102, %v99
    %s104 = scalar_lea.vmem [#allocation1], 24
    %s105 = scalar_lea.vmem [#allocation0], 48
    %s106 = scalar_lea.vmem %s105, 7 [#allocation0]
    %v107 = vld [vmem:[%s106] ss:$-1 sm:$0xff]
    %v108 = vrot.slane %v107, 1
    %109 = vst [vmem:[%s104] sm:$0xff] %v108
    %s110 = scalar_lea.vmem %s105, 8 [#allocation0]
    %s111 = scalar_lea.vmem %s110, 7 [#allocation0]
    %v112 = vld [vmem:[%s111] ss:$-1 sm:$0xff]
    %v113 = vrot.slane %v112, 1
    %v114 = vlaneseq
    %v115 = vshrl.u32 %v114, 7
    %vm116 = vcmp.lt.s32.totalorder %v115, 7
    %117 = vst.msk [vmem:[%s104] sm:$0xff] %vm116, %v113
    %s118 = scalar_lea.vmem [#allocation1], 32
    %s119 = scalar_lea.vmem [#allocation0], 64
    %s120 = scalar_lea.vmem %s119, 7 [#allocation0]
    %v121 = vld [vmem:[%s120] ss:$-1 sm:$0xff]
    %v122 = vrot.slane %v121, 1
    %123 = vst [vmem:[%s118] sm:$0xff] %v122
    %s124 = scalar_lea.vmem %s119, 8 [#allocation0]
    %s125 = scalar_lea.vmem %s124, 7 [#allocation0]
    %v126 = vld [vmem:[%s125] ss:$-1 sm:$0xff]
    %v127 = vrot.slane %v126, 1
    %v128 = vlaneseq
    %v129 = vshrl.u32 %v128, 7
    %vm130 = vcmp.lt.s32.totalorder %v129, 7
    %131 = vst.msk [vmem:[%s118] sm:$0xff] %vm130, %v127
    %s132 = scalar_lea.vmem [#allocation1], 40
    %s133 = scalar_lea.vmem [#allocation0], 80
    %s134 = scalar_lea.vmem %s133, 7 [#allocation0]
    %v135 = vld [vmem:[%s134] ss:$-1 sm:$0xff]
    %v136 = vrot.slane %v135, 1
    %137 = vst [vmem:[%s132] sm:$0xff] %v136
    %s138 = scalar_lea.vmem %s133, 8 [#allocation0]
    %s139 = scalar_lea.vmem %s138, 7 [#allocation0]
    %v140 = vld [vmem:[%s139] ss:$-1 sm:$0xff]
    %v141 = vrot.slane %v140, 1
    %v142 = vlaneseq
    %v143 = vshrl.u32 %v142, 7
    %vm144 = vcmp.lt.s32.totalorder %v143, 7
    %145 = vst.msk [vmem:[%s132] sm:$0xff] %vm144, %v141
    %s146 = scalar_lea.vmem [#allocation1], 48
    %s147 = scalar_lea.vmem [#allocation0], 96
    %s148 = scalar_lea.vmem %s147, 7 [#allocation0]
    %v149 = vld [vmem:[%s148] ss:$-1 sm:$0xff]
    %v150 = vrot.slane %v149, 1
    %151 = vst [vmem:[%s146] sm:$0xff] %v150
    %s152 = scalar_lea.vmem %s147, 8 [#allocation0]
    %s153 = scalar_lea.vmem %s152, 7 [#allocation0]
    %v154 = vld [vmem:[%s153] ss:$-1 sm:$0xff]
    %v155 = vrot.slane %v154, 1
    %v156 = vlaneseq
    %v157 = vshrl.u32 %v156, 7
    %vm158 = vcmp.lt.s32.totalorder %v157, 7
    %159 = vst.msk [vmem:[%s146] sm:$0xff] %vm158, %v155
    %s160 = scalar_lea.vmem [#allocation1], 56
    %s161 = scalar_lea.vmem [#allocation0], 112
    %s162 = scalar_lea.vmem %s161, 7 [#allocation0]
    %v163 = vld [vmem:[%s162] ss:$-1 sm:$0xff]
    %v164 = vrot.slane %v163, 1
    %165 = vst [vmem:[%s160] sm:$0xff] %v164
    %s166 = scalar_lea.vmem %s161, 8 [#allocation0]
    %s167 = scalar_lea.vmem %s166, 7 [#allocation0]
    %v168 = vld [vmem:[%s167] ss:$-1 sm:$0xff]
    %v169 = vrot.slane %v168, 1
    %v170 = vlaneseq
    %v171 = vshrl.u32 %v170, 7
    %vm172 = vcmp.lt.s32.totalorder %v171, 7
    %173 = vst.msk [vmem:[%s160] sm:$0xff] %vm172, %v169
    // Predicated region
    $region36: #{reverse.0} parent=1 // pred_check
      _
    $region37: #{reverse.0} parent=1 // pred_check_branch
      %175 = sbr.rel (0) target = $region39
    $region38: #{reverse.0} parent=1 // pred_region
      // Predicated region
      $region40: #{reverse.0} parent=38 // pred_check
        _
      $region41: #{reverse.0} parent=38 // pred_check_branch
        %177 = sbr.rel (0) target = $region43
      $region42: #{reverse.0} parent=38 // pred_region
        // Predicated region
        $region55: #{reverse.0} parent=42 // pred_check
          _
        $region56: #{reverse.0} parent=42 // pred_check_branch
          %207 = sbr.rel (0) target = $region58
        $region57: #{reverse.0} parent=42 // pred_region
          loop: start=0, step=1, limit=1
          $region59: #{reverse.0} parent=57 // loop_pre_header
            _
          $region60: #{reverse.0} parent=57 // loop_header
            %s209 = sphi 0, %s213
            %p210 = scmp.ge.s32.totalorder %s209, 1
            %s214 = sphi [#allocation1], [#allocation1]
            %s215 = sphi %s1, %s1
          $region61: #{reverse.0} parent=57 // loop_header_branch
            %212 = sbr.rel (%p210) target = $region65
          $region62: #{reverse.0} parent=57 // loop_body
            %v216 = vld [vmem:[%s214] sm:$0xff]
            %217 = vst [vmem:[%s215] sm:$0xff] %v216
            %v218 = vld [vmem:[%s214 + $0x8] sm:$0xff]
            %219 = vst [vmem:[%s215 + $0x8] sm:$0xff] %v218
            %v220 = vld [vmem:[%s214 + $0x10] sm:$0xff]
            %221 = vst [vmem:[%s215 + $0x10] sm:$0xff] %v220
            %v222 = vld [vmem:[%s214 + $0x18] sm:$0xff]
            %223 = vst [vmem:[%s215 + $0x18] sm:$0xff] %v222
            %v224 = vld [vmem:[%s214 + $0x20] sm:$0xff]
            %225 = vst [vmem:[%s215 + $0x20] sm:$0xff] %v224
            %v226 = vld [vmem:[%s214 + $0x28] sm:$0xff]
            %227 = vst [vmem:[%s215 + $0x28] sm:$0xff] %v226
            %v228 = vld [vmem:[%s214 + $0x30] sm:$0xff]
            %229 = vst [vmem:[%s215 + $0x30] sm:$0xff] %v228
            %v230 = vld [vmem:[%s214 + $0x38] sm:$0xff]
            %231 = vst [vmem:[%s215 + $0x38] sm:$0xff] %v230
          $region63: #{reverse.0} parent=57 // loop_footer
            %s213 = sadd.s32 1, %s209
          $region64: #{reverse.0} parent=57 // loop_footer_branch
            %208 = sbr.rel target = $region60
          $region65: #{reverse.0} parent=57 // loop_exit
            _
        $region58: #{reverse.0} parent=42 // pred_fallthru
          _
        // Predicated region
        $region66: #{reverse.0} parent=42 // pred_check
          _
        $region67: #{reverse.0} parent=42 // pred_check_branch
          %233 = sbr.rel target = $region69
        $region68: #{reverse.0} parent=42 // pred_region
          _
        $region69: #{reverse.0} parent=42 // pred_fallthru
          _
      $region43: #{reverse.0} parent=38 // pred_fallthru
        _
      // Predicated region
      $region44: #{reverse.0} parent=38 // pred_check
        _
      $region45: #{reverse.0} parent=38 // pred_check_branch
        %179 = sbr.rel target = $region47
      $region46: #{reverse.0} parent=38 // pred_region
        %s181 = ssub.s32 256, 1
        loop: start=0, step=1, limit=1
        $region48: #{reverse.0} parent=46 // loop_pre_header
          _
        $region49: #{reverse.0} parent=46 // loop_header
          %s183 = sphi 0, %s187
          %p184 = scmp.ge.s32.totalorder %s183, 1
          %s188 = sphi [#allocation1], [#allocation1]
          %s189 = sphi %s1, %s1
        $region50: #{reverse.0} parent=46 // loop_header_branch
          %186 = sbr.rel (%p184) target = $region54
        $region51: #{reverse.0} parent=46 // loop_body
          %v190 = vld [vmem:[%s188] sm:%s181]
          %191 = vst [vmem:[%s189] sm:%s181] %v190
          %v192 = vld [vmem:[%s188 + $0x8] sm:%s181]
          %193 = vst [vmem:[%s189 + $0x8] sm:%s181] %v192
          %v194 = vld [vmem:[%s188 + $0x10] sm:%s181]
          %195 = vst [vmem:[%s189 + $0x10] sm:%s181] %v194
          %v196 = vld [vmem:[%s188 + $0x18] sm:%s181]
          %197 = vst [vmem:[%s189 + $0x18] sm:%s181] %v196
          %v198 = vld [vmem:[%s188 + $0x20] sm:%s181]
          %199 = vst [vmem:[%s189 + $0x20] sm:%s181] %v198
          %v200 = vld [vmem:[%s188 + $0x28] sm:%s181]
          %201 = vst [vmem:[%s189 + $0x28] sm:%s181] %v200
          %v202 = vld [vmem:[%s188 + $0x30] sm:%s181]
          %203 = vst [vmem:[%s189 + $0x30] sm:%s181] %v202
          %v204 = vld [vmem:[%s188 + $0x38] sm:%s181]
          %205 = vst [vmem:[%s189 + $0x38] sm:%s181] %v204
        $region52: #{reverse.0} parent=46 // loop_footer
          %s187 = sadd.s32 1, %s183
        $region53: #{reverse.0} parent=46 // loop_footer_branch
          %182 = sbr.rel target = $region49
        $region54: #{reverse.0} parent=46 // loop_exit
          _
      $region47: #{reverse.0} parent=38 // pred_fallthru
        _
    $region39: #{reverse.0} parent=1 // pred_fallthru
      _
    %234 = vnop

</llo_original>
